<compile_context>
chip_gen: v6e
topology: v6e:2x2x1
jax: 0.10.0
libtpu: 0.0.40
codegen_flags: <defaults>
</compile_context>

<pallas_src>
import functools
import math

import jax
import jax.numpy as jnp
import numpy as np
from jax.experimental import pallas as pl
from jax.experimental.pallas import tpu as pltpu


def _round_up(x, m):
    return ((x + m - 1) // m) * m


def _curlfree_kernel(x_ref, y_ref, o_ref, *, d, length_scale, sigma_var):
    """One (batch, row-tile, col-tile) grid step.

    x_ref : (1, TN, d)   VMEM, TN = tn*d,  x_ref[0, r, e] = X[i0 + r//d, e]
    y_ref : (1, d, TM)   VMEM, TM = tm*d,  y_ref[0, e, s] = Y[j0 + s//d, e]
    o_ref : (1, TN, TM)  flattened gram tile:
            o_ref[0, r, s] = K[i0 + r//d, j0 + s//d, r%d, s%d]
    """
    TN = x_ref.shape[1]
    TM = y_ref.shape[2]

    xr = x_ref[0].astype(jnp.float32)          # (TN, d)
    yr = y_ref[0].astype(jnp.float32)          # (d, TM)

    inv_ls = 1.0 / length_scale
    neg_half_inv_ls = -0.5 * inv_ls            # folded trace-time constant

    # Per-coordinate pairwise differences, evaluated directly on the interleaved
    # (r = i*d + a, s = j*d + c) grid.  Lane-dense (TN, TM) slabs.
    diffs = []
    dists = None
    for e in range(d):
        de = xr[:, e:e + 1] - yr[e:e + 1, :]   # (TN, TM)
        diffs.append(de)
        dists = de * de if dists is None else dists + de * de

    # scalar RBF part: sigma_var * exp(-0.5 * ||x - y||^2 / length_scale)
    k = jnp.exp(dists * neg_half_inv_ls) * sigma_var          # (TN, TM)

    # a = r % d (row coordinate index), c = s % d (col coordinate index)
    row_i = jax.lax.broadcasted_iota(jnp.int32, (TN, TM), 0)
    col_i = jax.lax.broadcasted_iota(jnp.int32, (TN, TM), 1)
    if d & (d - 1) == 0:                       # power of two: cheap bitwise mask
        a_idx = jnp.bitwise_and(row_i, d - 1)
        c_idx = jnp.bitwise_and(col_i, d - 1)
    else:
        a_idx = row_i % d
        c_idx = col_i % d

    # Select diff along the row coordinate (a) and along the column coordinate (c).
    diff_a = diffs[d - 1]
    diff_c = diffs[d - 1]
    for e in range(d - 2, -1, -1):
        diff_a = jnp.where(a_idx == e, diffs[e], diff_a)
        diff_c = jnp.where(c_idx == e, diffs[e], diff_c)

    # (I[a,c] - diff_a * diff_c / length_scale) * k
    eye_k = jnp.where(a_idx == c_idx, k, 0.0)
    out = eye_k - (diff_a * diff_c) * (k * inv_ls)
    o_ref[0] = out.astype(o_ref.dtype)


class RBFCurlFreeKernel:
    def __init__(self, dim, length_scale, sigma_var=1.0, out_dtype=None):
        self.input_dim = dim
        self.rkhs_dim = dim
        self.length_scale = float(length_scale)
        self.sigma_var = float(sigma_var)
        self.out_dtype = out_dtype  # e.g. jnp.bfloat16 if downstream tolerates it

    def __call__(self, X, Y=None, flatten=True):
        # uprank_inputs semantics
        if Y is None:
            Y = X
        upranked = False
        if X.ndim == 2:
            X = X[None]
            upranked = True
        if Y.ndim == 2:
            Y = Y[None]
            upranked = True

        B, n, d = X.shape
        Bm, m, dy = Y.shape
        assert d == self.input_dim and dy == d and Bm == B

        out_dtype = X.dtype if self.out_dtype is None else self.out_dtype

        # --- tile sizes: TN = tn*d multiple of 8, TM = tm*d multiple of 128 -----
        n_unit = 8 // math.gcd(8, d)
        m_unit = 128 // math.gcd(128, d)
        # Cap output tiles around (512 sublanes, 1024 lanes) so the f32 working set
        # (output double buffer + full-res temporaries) stays well under the
        # tightest scoped-VMEM budget (v7x / v5e).
        tn_cap = max(n_unit, (512 // d) // n_unit * n_unit)
        tm_cap = max(m_unit, (1024 // d) // m_unit * m_unit)
        tn = min(_round_up(n, n_unit), tn_cap)
        tm = min(_round_up(m, m_unit), tm_cap)
        n_p = _round_up(n, tn)
        m_p = _round_up(m, tm)

        # --- wrapper-side glue on the (tiny) inputs only -------------------------
        Xp = X if n_p == n else jnp.pad(X, ((0, 0), (0, n_p - n), (0, 0)))
        Yp = Y if m_p == m else jnp.pad(Y, ((0, 0), (0, m_p - m), (0, 0)))
        # X repeated d times along rows: X_rep[b, i*d + a, e] = X[b, i, e]
        X_rep = jnp.repeat(Xp, d, axis=1)                              # (B, n_p*d, d)
        # Y^T repeated d times along cols: Yt_rep[b, e, j*d + c] = Y[b, j, e]
        Yt_rep = jnp.repeat(jnp.transpose(Yp, (0, 2, 1)), d, axis=2)   # (B, d, m_p*d)

        kern = functools.partial(
            _curlfree_kernel,
            d=d,
            length_scale=self.length_scale,
            sigma_var=self.sigma_var,
        )

        TN, TM = tn * d, tm * d
        out_p = pl.pallas_call(
            kern,
            out_shape=jax.ShapeDtypeStruct((B, n_p * d, m_p * d), out_dtype),
            grid_spec=pltpu.PrefetchScalarGridSpec(
                num_scalar_prefetch=0,
                grid=(B, n_p // tn, m_p // tm),
                in_specs=[
                    pl.BlockSpec((1, TN, d), lambda b, i, j: (b, i, 0)),
                    pl.BlockSpec((1, d, TM), lambda b, i, j: (b, 0, j)),
                ],
                out_specs=pl.BlockSpec((1, TN, TM), lambda b, i, j: (b, i, j)),
            ),
            compiler_params=pltpu.CompilerParams(
                dimension_semantics=("parallel", "parallel", "parallel"),
                vmem_limit_bytes=40 * 1024 * 1024,
            ),
        )(X_rep, Yt_rep)

        # Strip padding; flattened layout comes straight out of the kernel.
        K_flat = out_p[:, :n * d, :m * d]

        if flatten:
            K = K_flat
        else:
            # (B, n*d, m*d) -> (B, n, m, d, d); only needed for the alternate format.
            K = K_flat.reshape(B, n, d, m, d).transpose(0, 1, 3, 2, 4)

        if upranked:
            K = jnp.squeeze(K, axis=0)
        return K


def _reference_forward(X, Y, length_scale, sigma_var, flatten=True):
    """Pure-JAX reference mirroring the PyTorch forward exactly."""
    if Y is None:
        Y = X
    diff = X[..., :, None, :] - Y[..., None, :, :]            # (B, n, m, d)
    dists = jnp.sum(diff ** 2, axis=-1)                        # (B, n, m)
    k = sigma_var * jnp.exp(-0.5 * dists / length_scale)
    k = k[..., None, None]                                     # (B, n, m, 1, 1)
    outer = diff[..., :, None] * diff[..., None, :]            # (B, n, m, d, d)
    I = jnp.eye(X.shape[-1], dtype=X.dtype)
    K = (I - outer / length_scale) * k                         # (B, n, m, d, d)
    if flatten:
        B, n, m, d, _ = K.shape
        K = jnp.transpose(K, (0, 1, 3, 2, 4)).reshape(B, n * d, m * d)
    return K


if __name__ == "__main__":
    key = jax.random.PRNGKey(0)
    kx, ky = jax.random.split(key)

    B, n, m, d = 2, 16, 12, 2
    length_scale = 0.5
    sigma_var = 1.3

    X = jax.random.normal(kx, (B, n, d), dtype=jnp.float32)
    Y = jax.random.normal(ky, (B, m, d), dtype=jnp.float32)

    kernel = RBFCurlFreeKernel(d, length_scale, sigma_var=sigma_var)

    # batched, flattened output: (B, n*d, m*d)
    K = jax.block_until_ready(kernel(X, Y, flatten=True))
    K_ref = _reference_forward(X, Y, length_scale, sigma_var, flatten=True)
    assert K.shape == (B, n * d, m * d)
    np.testing.assert_allclose(np.asarray(K), np.asarray(K_ref),
                               rtol=1e-5, atol=1e-5)

    # non-flattened output: (B, n, m, d, d)
    K3 = jax.block_until_ready(kernel(X, Y, flatten=False))
    K3_ref = _reference_forward(X, Y, length_scale, sigma_var, flatten=False)
    assert K3.shape == (B, n, m, d, d)
    np.testing.assert_allclose(np.asarray(K3), np.asarray(K3_ref),
                               rtol=1e-5, atol=1e-5)

    # Y=None + non-batched uprank/squeeze path
    K2 = jax.block_until_ready(kernel(X[0], None, flatten=True))
    K2_ref = _reference_forward(X[0:1], X[0:1], length_scale, sigma_var,
                                flatten=True)[0]
    assert K2.shape == (n * d, n * d)
    np.testing.assert_allclose(np.asarray(K2), np.asarray(K2_ref),
                               rtol=1e-5, atol=1e-5)

    print("KERNEL_OK")
</pallas_src>

<mosaic_0001>
module attributes {stable_mosaic.version = 11 : i64} {
  func.func @_curlfree_kernel(%arg0: i32, %arg1: i32, %arg2: i32, %arg3: memref<1x32x2xf32, #tpu.memory_space<vmem>>, %arg4: memref<1x2x128xf32, #tpu.memory_space<vmem>>, %arg5: memref<1x32x128xf32, #tpu.memory_space<vmem>>) attributes {dimension_semantics = [#tpu.dimension_semantics<parallel>, #tpu.dimension_semantics<parallel>, #tpu.dimension_semantics<parallel>], iteration_bounds = array<i64: 2, 1, 1>, scalar_prefetch = 0 : i64, scratch_operands = 0 : i64, tpu.core_type = #tpu.core_type<tc>, window_params = [{transform_indices = @transform_0, window_bounds = array<i64: 1, 32, 2>}, {transform_indices = @transform_1, window_bounds = array<i64: 1, 2, 128>}, {transform_indices = @transform_2, window_bounds = array<i64: 1, 32, 128>}]} {
    %c0 = arith.constant 0 : index
    %c0_0 = arith.constant 0 : index
    %c0_1 = arith.constant 0 : index
    %0 = vector.load %arg3[%c0, %c0_0, %c0_1] : memref<1x32x2xf32, #tpu.memory_space<vmem>>, vector<1x32x2xf32>
    %1 = vector.shape_cast %0 : vector<1x32x2xf32> to vector<32x2xf32>
    %c0_2 = arith.constant 0 : index
    %c0_3 = arith.constant 0 : index
    %c0_4 = arith.constant 0 : index
    %2 = vector.load %arg4[%c0_2, %c0_3, %c0_4] : memref<1x2x128xf32, #tpu.memory_space<vmem>>, vector<1x2x128xf32>
    %3 = vector.shape_cast %2 : vector<1x2x128xf32> to vector<2x128xf32>
    %4 = vector.extract_strided_slice %1 {offsets = [0, 0], sizes = [32, 1], strides = [1, 1]} : vector<32x2xf32> to vector<32x1xf32>
    %5 = vector.extract_strided_slice %3 {offsets = [0, 0], sizes = [1, 128], strides = [1, 1]} : vector<2x128xf32> to vector<1x128xf32>
    %6 = vector.broadcast %4 : vector<32x1xf32> to vector<32x128xf32>
    %7 = vector.broadcast %5 : vector<1x128xf32> to vector<32x128xf32>
    %8 = arith.subf %6, %7 : vector<32x128xf32>
    %9 = arith.mulf %8, %8 : vector<32x128xf32>
    %10 = vector.extract_strided_slice %1 {offsets = [0, 1], sizes = [32, 1], strides = [1, 1]} : vector<32x2xf32> to vector<32x1xf32>
    %11 = vector.extract_strided_slice %3 {offsets = [1, 0], sizes = [1, 128], strides = [1, 1]} : vector<2x128xf32> to vector<1x128xf32>
    %12 = vector.broadcast %10 : vector<32x1xf32> to vector<32x128xf32>
    %13 = vector.broadcast %11 : vector<1x128xf32> to vector<32x128xf32>
    %14 = arith.subf %12, %13 : vector<32x128xf32>
    %15 = arith.mulf %14, %14 : vector<32x128xf32>
    %16 = arith.addf %9, %15 : vector<32x128xf32>
    %cst = arith.constant -1.000000e+00 : f32
    %17 = vector.broadcast %cst : f32 to vector<32x128xf32>
    %18 = arith.mulf %16, %17 : vector<32x128xf32>
    %19 = math.exp %18 : vector<32x128xf32>
    %cst_5 = arith.constant 1.300000e+00 : f32
    %20 = vector.broadcast %cst_5 : f32 to vector<32x128xf32>
    %21 = arith.mulf %19, %20 : vector<32x128xf32>
    %22 = tpu.iota {dimensions = array<i32: 0>} : vector<32x128xi32>
    %23 = tpu.iota {dimensions = array<i32: 1>} : vector<32x128xi32>
    %c1_i32 = arith.constant 1 : i32
    %24 = vector.broadcast %c1_i32 : i32 to vector<32x128xi32>
    %25 = arith.andi %22, %24 : vector<32x128xi32>
    %c1_i32_6 = arith.constant 1 : i32
    %26 = vector.broadcast %c1_i32_6 : i32 to vector<32x128xi32>
    %27 = arith.andi %23, %26 : vector<32x128xi32>
    %c0_i32 = arith.constant 0 : i32
    %28 = vector.broadcast %c0_i32 : i32 to vector<32x128xi32>
    %29 = arith.cmpi eq, %25, %28 : vector<32x128xi32>
    %30 = arith.select %29, %8, %14 : vector<32x128xi1>, vector<32x128xf32>
    %c0_i32_7 = arith.constant 0 : i32
    %31 = vector.broadcast %c0_i32_7 : i32 to vector<32x128xi32>
    %32 = arith.cmpi eq, %27, %31 : vector<32x128xi32>
    %33 = arith.select %32, %8, %14 : vector<32x128xi1>, vector<32x128xf32>
    %34 = arith.cmpi eq, %25, %27 : vector<32x128xi32>
    %cst_8 = arith.constant 0.000000e+00 : f32
    %35 = vector.broadcast %cst_8 : f32 to vector<32x128xf32>
    %36 = arith.select %34, %21, %35 : vector<32x128xi1>, vector<32x128xf32>
    %37 = arith.mulf %30, %33 : vector<32x128xf32>
    %cst_9 = arith.constant 2.000000e+00 : f32
    %38 = vector.broadcast %cst_9 : f32 to vector<32x128xf32>
    %39 = arith.mulf %21, %38 : vector<32x128xf32>
    %40 = arith.mulf %37, %39 : vector<32x128xf32>
    %41 = arith.subf %36, %40 : vector<32x128xf32>
    %c0_10 = arith.constant 0 : index
    %c0_11 = arith.constant 0 : index
    %c0_12 = arith.constant 0 : index
    %42 = vector.load %arg5[%c0_10, %c0_11, %c0_12] : memref<1x32x128xf32, #tpu.memory_space<vmem>>, vector<1x32x128xf32>
    %43 = vector.shape_cast %42 : vector<1x32x128xf32> to vector<32x128xf32>
    %44 = vector.shape_cast %41 : vector<32x128xf32> to vector<1x32x128xf32>
    tpu.vector_store %arg5[%c0_10, %c0_11, %c0_12], %44 {strides = array<i32>} : memref<1x32x128xf32, #tpu.memory_space<vmem>>, vector<1x32x128xf32>,
    return
  }
  func.func @transform_0(%arg0: i32, %arg1: i32, %arg2: i32) -> (i32, i32, i32) {
    %c0_i32 = arith.constant 0 : i32
    %c0_i32_0 = arith.constant 0 : i32
    return %arg0, %arg1, %c0_i32 : i32, i32, i32
  }
  func.func @transform_1(%arg0: i32, %arg1: i32, %arg2: i32) -> (i32, i32, i32) {
    %c0_i32 = arith.constant 0 : i32
    %c0_i32_0 = arith.constant 0 : i32
    return %arg0, %c0_i32, %arg2 : i32, i32, i32
  }
  func.func @transform_2(%arg0: i32, %arg1: i32, %arg2: i32) -> (i32, i32, i32) {
    %c0_i32 = arith.constant 0 : i32
    return %arg0, %arg1, %arg2 : i32, i32, i32
  }
}

</mosaic_0001>

<llo_original>
// kernel: tpu_custom_call.1
$region0: #{tpu_custom_call.1}
  #allocation0 [shape = 'u32[]', space=smem, size = 0x4, offset = 0x4, fixed_abs, tag = 'smem constant byte address 0x4 - core index']
  #allocation1 [shape = 'u32[144,128]{1,0:T(1,128)}', space=vmem, size = 0x12000, scoped, tag = 'internal scratch']
  %s0 = inlined_call_operand.vmem [shape: f32[2,32,2], index: 0, kind: input, shape index: {}]
  %s1 = inlined_call_operand.vmem [shape: f32[2,2,128], index: 1, kind: input, shape index: {}]
  %s2 = inlined_call_operand.hbm [shape: f32[2,32,128], index: 2, kind: output, shape index: {}]
  %s3 = sld [smem:[#allocation0]]
  $region41: #{tpu_custom_call.1} parent=0
    _
  %s5 = ssub.s32 1, %s3
  %s6 = scalar_select 0, %s5, %s3
  $region1: #{tpu_custom_call.1} parent=0
    #allocation2 [shape = 'u8[32768]{0}', space=vmem, size = 0x8000, scoped, tag = 'output window, operand 0']
    #allocation3 [shape = 's32[2]{0}', space=sflag, size = 0x8, scoped, tag = 'scoped memory for tpu_custom_call.1']
    %7 = vsyncpa [#allocation3], 0
    %s8 = scalar_lea.sflag [#allocation3], 1
    %9 = vsyncpa %s8, 0
    loop: start=0, step=1, limit=4
    $region2: #{tpu_custom_call.1} parent=1 // loop_pre_header
      _
    $region3: #{tpu_custom_call.1} parent=1 // loop_header
      %s11 = sphi 0, %s15
      %p12 = scmp.ge.s32.totalorder %s11, 4
      %s18 = sphi 0, %s37
      %s19 = sphi 0, %s33
      %s20 = sphi 0, %s29
      %s21 = sphi 0, %s18
      %s22 = sphi 0, %s19
      %s23 = sphi 0, %s20
      %s24 = sphi 0, %s21
      %s25 = sphi 0, %s22
      %s26 = sphi 0, %s23
      %s42 = sphi 0, %s44
      %s45 = sphi 0, %s42
      %s46 = sphi 0, %s45
      %s62 = sphi 0, %s46
      %s70 = sphi 0, %s72
      %s73 = sphi 0, %s70
      %s74 = sphi 0, %s73
      %s90 = sphi 0, %s74
      %s100 = sphi 0, %s102
      %s103 = sphi 0, %s100
      %s104 = sphi 0, %s103
      %s120 = sphi 0, %s104
    $region4: #{tpu_custom_call.1} parent=1 // loop_header_branch
      %14 = sbr.rel (%p12) target = $region8
    $region5: #{tpu_custom_call.1} parent=1 // loop_body
      %s16 = ssub.s32 %s11, 1
      %s17 = ssub.s32 %s11, 2
      %s27 = sadd.s32 1, %s20
      %p28 = scmp.ge.s32.totalorder %s27, 1
      %s29 = scalar_select %p28, 0, %s27
      %s30 = sadd.s32 1, %s19
      %s31 = scalar_select %p28, %s30, %s19
      %p32 = scmp.ge.s32.totalorder %s31, 1
      %s33 = scalar_select %p32, 0, %s31
      %s34 = sadd.s32 1, %s18
      %s35 = scalar_select %p32, %s34, %s18
      %p36 = scmp.ge.s32.totalorder %s35, 2
      %s37 = scalar_select %p36, 0, %s35
      %s38 = ssub.s32 %s18, %s37
      %s39 = ssub.s32 %s19, %s33
      %s40 = sor.u32 %s38, %s39
      %p41 = scmp.eq.s32.totalorder %s40, 0
      %s43 = sadd.s32 %s42, 1
      %s44 = scalar_select %p41, %s42, %s43
      %p47 = pneg %p41
      %p48 = scmp.eq.s32.totalorder %s11, 1
      %p49 = por %p47, %p48
      %p50 = scmp.ne.s32.totalorder %s42, %s45
      %p51 = scmp.eq.s32.totalorder %s11, 0
      %p52 = por %p50, %p51
      %p53 = scmp.ne.s32.totalorder %s42, %s45
      %p54 = scmp.eq.s32.totalorder %s16, 1
      %p55 = por %p53, %p54
      %p56 = scmp.ne.s32.totalorder %s45, %s46
      %p57 = scmp.eq.s32.totalorder %s16, 0
      %p58 = por %p56, %p57
      %p59 = scmp.ne.s32.totalorder %s45, %s46
      %p60 = scmp.eq.s32.totalorder %s17, 1
      %p61 = por %p59, %p60
      %p63 = scmp.ne.s32.totalorder %s46, %s62
      %p64 = scmp.eq.s32.totalorder %s17, 0
      %p65 = por %p63, %p64
      %s66 = ssub.s32 %s18, %s37
      %s67 = ssub.s32 %s20, %s29
      %s68 = sor.u32 %s66, %s67
      %p69 = scmp.eq.s32.totalorder %s68, 0
      %s71 = sadd.s32 %s70, 1
      %s72 = scalar_select %p69, %s70, %s71
      %p75 = pneg %p69
      %p76 = scmp.eq.s32.totalorder %s11, 1
      %p77 = por %p75, %p76
      %p78 = scmp.ne.s32.totalorder %s70, %s73
      %p79 = scmp.eq.s32.totalorder %s11, 0
      %p80 = por %p78, %p79
      %p81 = scmp.ne.s32.totalorder %s70, %s73
      %p82 = scmp.eq.s32.totalorder %s16, 1
      %p83 = por %p81, %p82
      %p84 = scmp.ne.s32.totalorder %s73, %s74
      %p85 = scmp.eq.s32.totalorder %s16, 0
      %p86 = por %p84, %p85
      %p87 = scmp.ne.s32.totalorder %s73, %s74
      %p88 = scmp.eq.s32.totalorder %s17, 1
      %p89 = por %p87, %p88
      %p91 = scmp.ne.s32.totalorder %s74, %s90
      %p92 = scmp.eq.s32.totalorder %s17, 0
      %p93 = por %p91, %p92
      %s94 = ssub.s32 %s18, %s37
      %s95 = ssub.s32 %s19, %s33
      %s96 = sor.u32 %s94, %s95
      %s97 = ssub.s32 %s20, %s29
      %s98 = sor.u32 %s96, %s97
      %p99 = scmp.eq.s32.totalorder %s98, 0
      %s101 = sadd.s32 %s100, 1
      %s102 = scalar_select %p99, %s100, %s101
      %p105 = pneg %p99
      %p106 = scmp.eq.s32.totalorder %s11, 1
      %p107 = por %p105, %p106
      %p108 = scmp.ne.s32.totalorder %s100, %s103
      %p109 = scmp.eq.s32.totalorder %s11, 0
      %p110 = por %p108, %p109
      %p111 = scmp.ne.s32.totalorder %s100, %s103
      %p112 = scmp.eq.s32.totalorder %s16, 1
      %p113 = por %p111, %p112
      %p114 = scmp.ne.s32.totalorder %s103, %s104
      %p115 = scmp.eq.s32.totalorder %s16, 0
      %p116 = por %p114, %p115
      %p117 = scmp.ne.s32.totalorder %s103, %s104
      %p118 = scmp.eq.s32.totalorder %s17, 1
      %p119 = por %p117, %p118
      %p121 = scmp.ne.s32.totalorder %s104, %s120
      %p122 = scmp.eq.s32.totalorder %s17, 0
      %p123 = por %p121, %p122
      %p124 = scmp.le.s32.totalorder 1, %s11
      %p125 = scmp.lt.s32.totalorder %s11, 3
      %p126 = pnand %p124, %p125
      %p127 = pneg %p126
      // Predicated region
      $region9: #{tpu_custom_call.1} parent=5 // pred_check
        _
      $region10: #{tpu_custom_call.1} parent=5 // pred_check_branch
        %129 = sbr.rel (%p126) target = $region12
      $region11: #{tpu_custom_call.1} parent=5 // pred_region
        %s130 = ssub.s32 %s11, 1
      $region12: #{tpu_custom_call.1} parent=5 // pred_fallthru
        _
      %p131 = scmp.lt.s32.totalorder %s11, 2
      // Predicated region
      $region13: #{tpu_custom_call.1} parent=5 // pred_check
        %p132 = pneg %p131
      $region14: #{tpu_custom_call.1} parent=5 // pred_check_branch
        %134 = sbr.rel (%p132) target = $region16
      $region15: #{tpu_custom_call.1} parent=5 // pred_region
        // Predicated region
        $region17: #{tpu_custom_call.1} parent=15 // pred_check
          %p135 = pneg %p52
        $region18: #{tpu_custom_call.1} parent=15 // pred_check_branch
          %137 = sbr.rel (%p135) target = $region20
        $region19: #{tpu_custom_call.1} parent=15 // pred_region
          %s138 = smul.u32 4, %s19
          %p139 = scmp.lt.s32.totalorder %s18, 1
          %s140 = scalar_select %p139, %s18, 1
          %p141 = scmp.lt.s32.totalorder %s138, 3
          %s142 = scalar_select %p141, %s138, 3
          %s143 = smul.addr %s140, 4
          %s144 = sadd.s32 %s142, %s143
          %s145 = smul.addr %s144, 8
          %s146 = scalar_lea.vmem %s0, %s145
          %s147 = smul.u32 4, %s19
        $region20: #{tpu_custom_call.1} parent=15 // pred_fallthru
          _
        // Predicated region
        $region21: #{tpu_custom_call.1} parent=15 // pred_check
          %p148 = pneg %p80
        $region22: #{tpu_custom_call.1} parent=15 // pred_check_branch
          %150 = sbr.rel (%p148) target = $region24
        $region23: #{tpu_custom_call.1} parent=15 // pred_region
          %p151 = scmp.lt.s32.totalorder %s18, 1
          %s152 = scalar_select %p151, %s18, 1
          %p153 = scmp.lt.s32.totalorder %s20, 0
          %s154 = scalar_select %p153, %s20, 0
          %s155 = sadd.s32 %s154, %s152
          %s156 = smul.addr %s155, 2
          %s157 = scalar_lea.vmem %s1, %s156
        $region24: #{tpu_custom_call.1} parent=15 // pred_fallthru
          _
      $region16: #{tpu_custom_call.1} parent=5 // pred_fallthru
        _
      %p158 = scmp.le.s32.totalorder 1, %s11
      %p159 = scmp.lt.s32.totalorder %s11, 3
      %p160 = pnand %p158, %p159
      %p161 = pneg %p160
      // Predicated region
      $region25: #{tpu_custom_call.1} parent=5 // pred_check
        _
      $region26: #{tpu_custom_call.1} parent=5 // pred_check_branch
        %163 = sbr.rel (%p160) target = $region28
      $region27: #{tpu_custom_call.1} parent=5 // pred_region
        %s164 = ssub.s32 %s11, 1
        %s165 = smul.u32 4, %s22
        %p166 = scmp.lt.s32.totalorder %s21, 1
        %s167 = scalar_select %p166, %s21, 1
        %p168 = scmp.lt.s32.totalorder %s165, 3
        %s169 = scalar_select %p168, %s165, 3
        %s170 = smul.addr %s167, 4
        %s171 = sadd.s32 %s169, %s170
        %s172 = smul.addr %s171, 8
        %s173 = scalar_lea.vmem %s0, %s172
        %p174 = pneg %p58
        %p175 = pneg %p55
        %p176 = scmp.lt.s32.totalorder %s21, 1
        %s177 = scalar_select %p176, %s21, 1
        %p178 = scmp.lt.s32.totalorder %s23, 0
        %s179 = scalar_select %p178, %s23, 0
        %s180 = sadd.s32 %s179, %s177
        %s181 = smul.addr %s180, 2
        %s182 = scalar_lea.vmem %s1, %s181
        %p183 = pneg %p86
        %p184 = pneg %p83
        %p185 = pneg %p116
        %p186 = pneg %p113
        %s187 = sand.u32 %s103, 1
        %s188 = scalar_lea.sflag [#allocation3], %s187
        %s189 = sand.u32 %s103, 1
        %s190 = smul.addr %s189, 32
        %s191 = scalar_lea.vmem [#allocation2], %s190
        %s192 = smul.u32 4, %s22
        %p193 = scmp.lt.s32.totalorder %s21, 1
        %s194 = scalar_select %p193, %s21, 1
        %p195 = scmp.lt.s32.totalorder %s192, 3
        %s196 = scalar_select %p195, %s192, 3
        %s197 = smul.addr %s194, 4
        %s198 = sadd.s32 %s196, %s197
        %s199 = smul.addr %s198, 8
        %s200 = scalar_lea.vmem %s0, %s199
        %s201 = smul.u32 4, %s22
        %p202 = scmp.lt.s32.totalorder %s21, 1
        %s203 = scalar_select %p202, %s21, 1
        %p204 = scmp.lt.s32.totalorder %s23, 0
        %s205 = scalar_select %p204, %s23, 0
        %s206 = sadd.s32 %s205, %s203
        %s207 = smul.addr %s206, 2
        %s208 = scalar_lea.vmem %s1, %s207
        %s209 = smul.u32 4, %s22
        %v210 = vld [vmem:[%s200] sm:$0xff]
        %v211 = vld [vmem:[%s200 + $0x8] sm:$0xff]
        %v212 = vld [vmem:[%s200 + $0x10] sm:$0xff]
        %v213 = vld [vmem:[%s200 + $0x18] sm:$0xff]
        %v214 = vld [vmem:[%s208] sm:$0x3]
        %216 = vset.pattern.permute.xlu0 0
        %217 = vperm.xlu0 %216, %v210
        %v218 = vpop.permute.xlu0 %217
        %221 = vset.pattern.permute.xlu0 0
        %222 = vperm.xlu0 %221, %v211
        %v223 = vpop.permute.xlu0 %222
        %226 = vset.pattern.permute.xlu0 0
        %227 = vperm.xlu0 %226, %v212
        %v228 = vpop.permute.xlu0 %227
        %231 = vset.pattern.permute.xlu0 0
        %232 = vperm.xlu0 %231, %v213
        %v233 = vpop.permute.xlu0 %232
        %v235 = vlaneseq
        %v236 = vshrl.u32 %v235, 7
        %v237 = vsub.s32 0, %v236
        %v238 = vrot.slane %v214, %v237
        %v239 = vsub.f32 %v218, %v238
        %v240 = vsub.f32 %v223, %v238
        %v241 = vsub.f32 %v228, %v238
        %v242 = vsub.f32 %v233, %v238
        %v243 = vmul.f32 %v239, %v239
        %v244 = vmul.f32 %v240, %v240
        %v245 = vmul.f32 %v241, %v241
        %v246 = vmul.f32 %v242, %v242
        %247 = vset.pattern.permute.xlu0 1
        %248 = vperm.xlu0 %247, %v210
        %v249 = vpop.permute.xlu0 %248
        %251 = vset.pattern.permute.xlu0 1
        %252 = vperm.xlu0 %251, %v211
        %v253 = vpop.permute.xlu0 %252
        %255 = vset.pattern.permute.xlu0 1
        %256 = vperm.xlu0 %255, %v212
        %v257 = vpop.permute.xlu0 %256
        %259 = vset.pattern.permute.xlu0 1
        %260 = vperm.xlu0 %259, %v213
        %v261 = vpop.permute.xlu0 %260
        %v263 = vlaneseq
        %v264 = vshrl.u32 %v263, 7
        %v265 = vsub.s32 1, %v264
        %v266 = vrot.slane %v214, %v265
        %v267 = vsub.f32 %v249, %v266
        %v268 = vsub.f32 %v253, %v266
        %v269 = vsub.f32 %v257, %v266
        %v270 = vsub.f32 %v261, %v266
        %v271 = vmul.f32 %v267, %v267
        %v272 = vmul.f32 %v268, %v268
        %v273 = vmul.f32 %v269, %v269
        %v274 = vmul.f32 %v270, %v270
        %v275 = vadd.f32 %v243, %v271
        %v276 = vadd.f32 %v244, %v272
        %v277 = vadd.f32 %v245, %v273
        %v278 = vadd.f32 %v246, %v274
        %v279 = vmul.f32 %v275, -1.0
        %v280 = vmul.f32 %v276, -1.0
        %v281 = vmul.f32 %v277, -1.0
        %v282 = vmul.f32 %v278, -1.0
        %v283 = vmul.f32 %v279, 1.442695
        %v284 = vpow.pop %v283
        %v285 = vmul.f32 %v280, 1.442695
        %v286 = vpow.pop %v285
        %v287 = vmul.f32 %v281, 1.442695
        %v288 = vpow.pop %v287
        %v289 = vmul.f32 %v282, 1.442695
        %v290 = vpow.pop %v289
        %v291 = vmul.f32 %v284, 1.3
        %v292 = vmul.f32 %v286, 1.3
        %v293 = vmul.f32 %v288, 1.3
        %v294 = vmul.f32 %v290, 1.3
        %v295 = vlaneseq
        %v296 = vshrl.u32 %v295, 7
        %v297 = vadd.s32 %v296, 8
        %v298 = vadd.s32 %v296, 16
        %v299 = vadd.s32 %v296, 24
        %v300 = vlaneseq
        %v301 = vand.u32 %v300, 127
        %v302 = vand.u32 %v296, 1
        %v303 = vand.u32 %v297, 1
        %v304 = vand.u32 %v298, 1
        %v305 = vand.u32 %v299, 1
        %v306 = vand.u32 %v301, 1
        %vm307 = vcmp.eq.s32.totalorder %v302, 0
        %vm308 = vcmp.eq.s32.totalorder %v303, 0
        %vm309 = vcmp.eq.s32.totalorder %v304, 0
        %vm310 = vcmp.eq.s32.totalorder %v305, 0
        %v311 = vsel %vm307, %v239, %v267
        %v312 = vsel %vm308, %v240, %v268
        %v313 = vsel %vm309, %v241, %v269
        %v314 = vsel %vm310, %v242, %v270
        %vm315 = vcmp.eq.s32.totalorder %v306, 0
        %v316 = vsel %vm315, %v239, %v267
        %v317 = vsel %vm315, %v240, %v268
        %v318 = vsel %vm315, %v241, %v269
        %v319 = vsel %vm315, %v242, %v270
        %vm320 = vcmp.eq.s32.totalorder %v302, %v306
        %vm321 = vcmp.eq.s32.totalorder %v303, %v306
        %vm322 = vcmp.eq.s32.totalorder %v304, %v306
        %vm323 = vcmp.eq.s32.totalorder %v305, %v306
        %v324 = vsel %vm320, %v291, 0.0
        %v325 = vsel %vm321, %v292, 0.0
        %v326 = vsel %vm322, %v293, 0.0
        %v327 = vsel %vm323, %v294, 0.0
        %v328 = vmul.f32 %v311, %v316
        %v329 = vmul.f32 %v312, %v317
        %v330 = vmul.f32 %v313, %v318
        %v331 = vmul.f32 %v314, %v319
        %v332 = vmul.f32 %v291, 2.0
        %v333 = vmul.f32 %v292, 2.0
        %v334 = vmul.f32 %v293, 2.0
        %v335 = vmul.f32 %v294, 2.0
        %v336 = vmul.f32 %v328, %v332
        %v337 = vmul.f32 %v329, %v333
        %v338 = vmul.f32 %v330, %v334
        %v339 = vmul.f32 %v331, %v335
        %v340 = vsub.f32 %v324, %v336
        %v341 = vsub.f32 %v325, %v337
        %v342 = vsub.f32 %v326, %v338
        %v343 = vsub.f32 %v327, %v339
        %344 = vst [vmem:[%s191] sm:$0xff] %v340
        %345 = vst [vmem:[%s191 + $0x8] sm:$0xff] %v341
        %346 = vst [vmem:[%s191 + $0x10] sm:$0xff] %v342
        %347 = vst [vmem:[%s191 + $0x18] sm:$0xff] %v343
        %s348 = sand.u32 %s103, 1
        %s349 = scalar_lea.sflag [#allocation3], %s348
        %s350 = sand.u32 %s103, 1
        %s351 = smul.addr %s350, 32
        %s352 = scalar_lea.vmem [#allocation2], %s351
        // Predicated region
        $region29: #{tpu_custom_call.1} parent=27 // pred_check
          %p353 = pneg %p113
        $region30: #{tpu_custom_call.1} parent=27 // pred_check_branch
          %355 = sbr.rel (%p353) target = $region32
        $region31: #{tpu_custom_call.1} parent=27 // pred_region
          %s356 = smul.u32 4, %s22
          %s358 = ssub.s32 512, 512
          %359 = vsyncadd %s349, %s358
          %s360 = sadd.s32 %s23, %s356
          %s361 = smul.addr %s21, 4
          %s362 = sadd.s32 %s360, %s361
          %s363 = smul.addr %s362, 128
          %s364 = scalar_lea.hbm %s2, %s363
          %s365 = sshll.u32 %s352, 4
          %s366 = int_to_ptr.vmem [resolvable:$true] %s365
          %371 = dma.vmem_to_hbm [thread:$0]  %s366, 512, %s364, %s349, 128, 128, 8
        $region32: #{tpu_custom_call.1} parent=27 // pred_fallthru
          _
      $region28: #{tpu_custom_call.1} parent=5 // pred_fallthru
        _
      %p372 = scmp.le.s32.totalorder 2, %s11
      // Predicated region
      $region33: #{tpu_custom_call.1} parent=5 // pred_check
        %p373 = pneg %p372
      $region34: #{tpu_custom_call.1} parent=5 // pred_check_branch
        %375 = sbr.rel (%p373) target = $region36
      $region35: #{tpu_custom_call.1} parent=5 // pred_region
        %s376 = ssub.s32 %s11, 2
        // Predicated region
        $region37: #{tpu_custom_call.1} parent=35 // pred_check
          %p377 = pneg %p119
        $region38: #{tpu_custom_call.1} parent=35 // pred_check_branch
          %379 = sbr.rel (%p377) target = $region40
        $region39: #{tpu_custom_call.1} parent=35 // pred_region
          %s380 = sand.u32 %s104, 1
          %s381 = scalar_lea.sflag [#allocation3], %s380
          %s382 = sand.u32 %s104, 1
          %s383 = smul.addr %s382, 32
          %s384 = scalar_lea.vmem [#allocation2], %s383
          %385 = dma.done %s381, 512
        $region40: #{tpu_custom_call.1} parent=35 // pred_fallthru
          _
      $region36: #{tpu_custom_call.1} parent=5 // pred_fallthru
        _
    $region6: #{tpu_custom_call.1} parent=1 // loop_footer
      %s15 = sadd.s32 1, %s11
    $region7: #{tpu_custom_call.1} parent=1 // loop_footer_branch
      %10 = sbr.rel target = $region3
    $region8: #{tpu_custom_call.1} parent=1 // loop_exit
      _
    %386 = vsyncpa [#allocation3], 1
    %s387 = scalar_lea.sflag [#allocation3], 1
    %388 = vsyncpa %s387, 1

</llo_original>
